<compile_context>
chip_gen: v7x
topology: tpu7x:2x2x1
jax: 0.10.0
libtpu: 0.0.40
codegen_flags: <defaults>
</compile_context>

<pallas_src>
import numpy as np
import jax
import jax.numpy as jnp
from jax.experimental import pallas as pl
from jax.experimental.pallas import tpu as pltpu

LANE = 128


def _round_up(x, m):
    return (x + m - 1) // m * m


def _cdiv(a, b):
    return -(-a // b)


def actor_kernel(s_ref, w1_ref, b1_ref, w2_ref, b2_ref, w3_ref, b3_ref, o_ref):
    # fc1 + ReLU (bf16/f32 MXU operands, f32 accumulation, f32 elementwise)
    x = s_ref[...].astype(w1_ref.dtype)
    h1 = jnp.dot(x, w1_ref[...], preferred_element_type=jnp.float32) + b1_ref[...]
    h1 = jnp.maximum(h1, 0.0)
    # fc2 + ReLU
    h2 = jnp.dot(h1.astype(w2_ref.dtype), w2_ref[...],
                 preferred_element_type=jnp.float32) + b2_ref[...]
    h2 = jnp.maximum(h2, 0.0)
    # fc3 + numerically-stable softmax along the feature axis.
    # Padded logit lanes carry a -1e30 bias -> exp underflows to exactly 0.
    logits = jnp.dot(h2.astype(w3_ref.dtype), w3_ref[...],
                     preferred_element_type=jnp.float32) + b3_ref[...]
    m = jnp.max(logits, axis=-1, keepdims=True)
    e = jnp.exp(logits - m)
    denom = jnp.sum(e, axis=-1, keepdims=True)
    # Exact divide (not approx reciprocal) so rows sum to 1 to f32 precision.
    o_ref[...] = (e / denom).astype(o_ref.dtype)


def prepare_params(params, *, use_bf16=True):
    """One-time padding / casting of the weights (do NOT call per forward pass).

    params = (w1, b1, w2, b2, w3, b3), weights stored (in_features, out_features).
    Returns lane-padded (128) weight/bias copies; weights optionally cast to bf16,
    biases stay f32. Padded fc3 lanes get a -1e30 bias so softmax over them is 0.
    """
    w1, b1, w2, b2, w3, b3 = params
    state, hidden = w1.shape
    action = w3.shape[1]
    hidden_p = _round_up(hidden, LANE)
    action_p = _round_up(action, LANE)
    wd = jnp.bfloat16 if use_bf16 else jnp.float32

    w1_p = jnp.zeros((state, hidden_p), wd).at[:, :hidden].set(w1.astype(wd))
    b1_p = jnp.zeros((1, hidden_p), jnp.float32).at[:, :hidden].set(b1)
    w2_p = jnp.zeros((hidden_p, hidden_p), wd).at[:hidden, :hidden].set(w2.astype(wd))
    b2_p = jnp.zeros((1, hidden_p), jnp.float32).at[:, :hidden].set(b2)
    w3_p = jnp.zeros((hidden_p, action_p), wd).at[:hidden, :action].set(w3.astype(wd))
    b3_p = jnp.full((1, action_p), -1e30, jnp.float32).at[:, :action].set(b3)
    return (w1_p, b1_p, w2_p, b2_p, w3_p, b3_p)


def actor_forward(s, padded_params, *, action_size, block_batch=1024, out_dtype=None):
    """Actor forward pass. `padded_params` comes from prepare_params()."""
    w1_p, b1_p, w2_p, b2_p, w3_p, b3_p = padded_params
    batch, state = s.shape
    hidden_p = w1_p.shape[1]
    action_p = w3_p.shape[1]

    use_bf16 = (w1_p.dtype == jnp.bfloat16)
    if out_dtype is None:
        out_dtype = jnp.bfloat16 if use_bf16 else jnp.float32

    # Tile the batch: multiple of 16 for bf16 (native (16,128) tile), 8 otherwise.
    # Derive tb from the step count so padding waste stays < tb, and force >=2 steps
    # when there is enough work so both v7x TensorCores get a share of the batch axis.
    min_tb = 16 if use_bf16 else 8
    steps = max(1, _cdiv(batch, int(block_batch)))
    if steps < 2 and batch >= 2 * min_tb:
        steps = 2
    tb = _round_up(_cdiv(batch, steps), min_tb)
    batch_p = _round_up(batch, tb)

    # Only the batch dim is padded (cheap); feature dims are streamed at their true width.
    if batch_p != batch:
        s = jnp.pad(s, ((0, batch_p - batch), (0, 0)))

    grid = (batch_p // tb,)
    resident = lambda i: (0, 0)  # weights/biases stay VMEM-resident across grid iterations

    out_p = pl.pallas_call(
        actor_kernel,
        out_shape=jax.ShapeDtypeStruct((batch_p, action_p), out_dtype),
        grid=grid,
        in_specs=[
            pl.BlockSpec((tb, state), lambda i: (i, 0)),        # streamed activations (raw width)
            pl.BlockSpec((state, hidden_p), resident),          # w1
            pl.BlockSpec((1, hidden_p), resident),              # b1
            pl.BlockSpec((hidden_p, hidden_p), resident),       # w2
            pl.BlockSpec((1, hidden_p), resident),              # b2
            pl.BlockSpec((hidden_p, action_p), resident),       # w3
            pl.BlockSpec((1, action_p), resident),              # b3
        ],
        out_specs=pl.BlockSpec((tb, action_p), lambda i: (i, 0)),
        compiler_params=pltpu.CompilerParams(
            dimension_semantics=("parallel",),
        ),
    )(s, w1_p, b1_p, w2_p, b2_p, w3_p, b3_p)

    return out_p[:batch, :action_size]


def fanin_init_jax(key, shape, fanin=None):
    # Mirrors fanin_init: uniform(-1/sqrt(fanin), 1/sqrt(fanin)); shape is (in, out) transposed.
    fanin = fanin or shape[0]
    v = 1.0 / np.sqrt(fanin)
    return jax.random.uniform(key, shape, jnp.float32, -v, v)


def make_params(key, state_size, action_size, hidden_size=40, init_w=0.03):
    ks = jax.random.split(key, 6)
    # weights stored as (in_features, out_features), f32 master copies
    w1 = fanin_init_jax(ks[0], (state_size, hidden_size), fanin=state_size)
    b1 = jax.random.uniform(ks[1], (1, hidden_size), jnp.float32,
                            -1.0 / np.sqrt(state_size), 1.0 / np.sqrt(state_size))
    w2 = fanin_init_jax(ks[2], (hidden_size, hidden_size), fanin=hidden_size)
    b2 = jax.random.uniform(ks[3], (1, hidden_size), jnp.float32,
                            -1.0 / np.sqrt(hidden_size), 1.0 / np.sqrt(hidden_size))
    w3 = jax.random.uniform(ks[4], (hidden_size, action_size), jnp.float32, -init_w, init_w)
    b3 = jax.random.uniform(ks[5], (1, action_size), jnp.float32, -init_w, init_w)
    return (w1, b1, w2, b2, w3, b3)


def _reference(s, params):
    w1, b1, w2, b2, w3, b3 = params
    h1 = jnp.maximum(s @ w1 + b1, 0.0)
    h2 = jnp.maximum(h1 @ w2 + b2, 0.0)
    return jax.nn.softmax(h2 @ w3 + b3, axis=1)


if __name__ == "__main__":
    key = jax.random.PRNGKey(0)
    k_in, k_par = jax.random.split(key)

    batch, state_size, action_size, hidden_size = 4, 8, 6, 40
    s = jax.random.normal(k_in, (batch, state_size), jnp.float32)
    params = make_params(k_par, state_size, action_size, hidden_size)
    ref = np.asarray(_reference(s, params))

    fwd = jax.jit(actor_forward, static_argnames=("action_size", "block_batch", "out_dtype"))

    # f32 path: tight check against the plain-JAX reference; rows sum to 1 to f32 precision.
    p_f32 = prepare_params(params, use_bf16=False)
    out_f32 = jax.block_until_ready(fwd(s, p_f32, action_size=action_size))
    out_f32 = np.asarray(out_f32)
    np.testing.assert_allclose(out_f32, ref, rtol=1e-3, atol=1e-3)
    np.testing.assert_allclose(out_f32.sum(axis=1), np.ones(batch), rtol=1e-5, atol=1e-5)

    # bf16 perf path (bf16 MXU operands + bf16 output store, f32 accum/softmax math).
    p_bf16 = prepare_params(params, use_bf16=True)
    out_bf16 = jax.block_until_ready(fwd(s, p_bf16, action_size=action_size))
    assert out_bf16.shape == (batch, action_size)
    out_bf16_f = np.asarray(out_bf16, dtype=np.float32)
    np.testing.assert_allclose(out_bf16_f, ref, rtol=3e-2, atol=3e-2)
    np.testing.assert_allclose(out_bf16_f.sum(axis=1), np.ones(batch), rtol=2e-2, atol=2e-2)

    print("KERNEL_OK")
</pallas_src>

<mosaic_0001>
module attributes {stable_mosaic.version = 11 : i64} {
  func.func @actor_kernel(%arg0: i32, %arg1: memref<8x8xf32, #tpu.memory_space<vmem>>, %arg2: memref<8x128xf32, #tpu.memory_space<vmem>>, %arg3: memref<1x128xf32, #tpu.memory_space<vmem>>, %arg4: memref<128x128xf32, #tpu.memory_space<vmem>>, %arg5: memref<1x128xf32, #tpu.memory_space<vmem>>, %arg6: memref<128x128xf32, #tpu.memory_space<vmem>>, %arg7: memref<1x128xf32, #tpu.memory_space<vmem>>, %arg8: memref<8x128xf32, #tpu.memory_space<vmem>>) attributes {dimension_semantics = [#tpu.dimension_semantics<parallel>], iteration_bounds = array<i64: 1>, scalar_prefetch = 0 : i64, scratch_operands = 0 : i64, tpu.core_type = #tpu.core_type<tc>, window_params = [{transform_indices = @transform_0, window_bounds = array<i64: 8, 8>}, {pipeline_mode = #tpu.pipeline_mode<synchronous>, transform_indices = @transform_1, window_bounds = array<i64: 8, 128>}, {pipeline_mode = #tpu.pipeline_mode<synchronous>, transform_indices = @transform_2, window_bounds = array<i64: 1, 128>}, {pipeline_mode = #tpu.pipeline_mode<synchronous>, transform_indices = @transform_3, window_bounds = array<i64: 128, 128>}, {pipeline_mode = #tpu.pipeline_mode<synchronous>, transform_indices = @transform_4, window_bounds = array<i64: 1, 128>}, {pipeline_mode = #tpu.pipeline_mode<synchronous>, transform_indices = @transform_5, window_bounds = array<i64: 128, 128>}, {pipeline_mode = #tpu.pipeline_mode<synchronous>, transform_indices = @transform_6, window_bounds = array<i64: 1, 128>}, {transform_indices = @transform_7, window_bounds = array<i64: 8, 128>}]} {
    %c0 = arith.constant 0 : index
    %c0_0 = arith.constant 0 : index
    %0 = vector.load %arg1[%c0, %c0_0] : memref<8x8xf32, #tpu.memory_space<vmem>>, vector<8x8xf32>
    %c0_1 = arith.constant 0 : index
    %c0_2 = arith.constant 0 : index
    %1 = vector.load %arg2[%c0_1, %c0_2] : memref<8x128xf32, #tpu.memory_space<vmem>>, vector<8x128xf32>
    %cst = arith.constant dense<0.000000e+00> : vector<8x128xf32>
    %2 = tpu.matmul %0, %1, %cst {dimension_numbers = #tpu.dot_dimension_numbers<[1], [0], [0], [1], [0, 0, 1, 1], [], []>} : vector<8x8xf32>, vector<8x128xf32>, vector<8x128xf32> -> vector<8x128xf32>
    %c0_3 = arith.constant 0 : index
    %c0_4 = arith.constant 0 : index
    %3 = vector.load %arg3[%c0_3, %c0_4] : memref<1x128xf32, #tpu.memory_space<vmem>>, vector<1x128xf32>
    %4 = vector.broadcast %3 : vector<1x128xf32> to vector<8x128xf32>
    %5 = arith.addf %2, %4 : vector<8x128xf32>
    %cst_5 = arith.constant 0.000000e+00 : f32
    %6 = vector.broadcast %cst_5 : f32 to vector<8x128xf32>
    %7 = arith.maximumf %5, %6 : vector<8x128xf32>
    %c0_6 = arith.constant 0 : index
    %c0_7 = arith.constant 0 : index
    %8 = vector.load %arg4[%c0_6, %c0_7] : memref<128x128xf32, #tpu.memory_space<vmem>>, vector<128x128xf32>
    %cst_8 = arith.constant dense<0.000000e+00> : vector<8x128xf32>
    %9 = tpu.matmul %7, %8, %cst_8 {dimension_numbers = #tpu.dot_dimension_numbers<[1], [0], [0], [1], [0, 0, 1, 1], [], []>} : vector<8x128xf32>, vector<128x128xf32>, vector<8x128xf32> -> vector<8x128xf32>
    %c0_9 = arith.constant 0 : index
    %c0_10 = arith.constant 0 : index
    %10 = vector.load %arg5[%c0_9, %c0_10] : memref<1x128xf32, #tpu.memory_space<vmem>>, vector<1x128xf32>
    %11 = vector.broadcast %10 : vector<1x128xf32> to vector<8x128xf32>
    %12 = arith.addf %9, %11 : vector<8x128xf32>
    %cst_11 = arith.constant 0.000000e+00 : f32
    %13 = vector.broadcast %cst_11 : f32 to vector<8x128xf32>
    %14 = arith.maximumf %12, %13 : vector<8x128xf32>
    %c0_12 = arith.constant 0 : index
    %c0_13 = arith.constant 0 : index
    %15 = vector.load %arg6[%c0_12, %c0_13] : memref<128x128xf32, #tpu.memory_space<vmem>>, vector<128x128xf32>
    %cst_14 = arith.constant dense<0.000000e+00> : vector<8x128xf32>
    %16 = tpu.matmul %14, %15, %cst_14 {dimension_numbers = #tpu.dot_dimension_numbers<[1], [0], [0], [1], [0, 0, 1, 1], [], []>} : vector<8x128xf32>, vector<128x128xf32>, vector<8x128xf32> -> vector<8x128xf32>
    %c0_15 = arith.constant 0 : index
    %c0_16 = arith.constant 0 : index
    %17 = vector.load %arg7[%c0_15, %c0_16] : memref<1x128xf32, #tpu.memory_space<vmem>>, vector<1x128xf32>
    %18 = vector.broadcast %17 : vector<1x128xf32> to vector<8x128xf32>
    %19 = arith.addf %16, %18 : vector<8x128xf32>
    %cst_17 = arith.constant dense<0xFF800000> : vector<8xf32>
    %20 = vector.multi_reduction <maximumf>, %19, %cst_17 [1] : vector<8x128xf32> to vector<8xf32>
    %21 = vector.shape_cast %20 : vector<8xf32> to vector<8x1xf32>
    %22 = vector.broadcast %21 : vector<8x1xf32> to vector<8x128xf32>
    %23 = arith.subf %19, %22 : vector<8x128xf32>
    %24 = math.exp %23 : vector<8x128xf32>
    %cst_18 = arith.constant dense<0.000000e+00> : vector<8xf32>
    %25 = vector.multi_reduction <add>, %24, %cst_18 [1] : vector<8x128xf32> to vector<8xf32>
    %26 = vector.shape_cast %25 : vector<8xf32> to vector<8x1xf32>
    %27 = vector.broadcast %26 : vector<8x1xf32> to vector<8x128xf32>
    %28 = arith.divf %24, %27 : vector<8x128xf32>
    %c0_19 = arith.constant 0 : index
    %c0_20 = arith.constant 0 : index
    %29 = vector.load %arg8[%c0_19, %c0_20] : memref<8x128xf32, #tpu.memory_space<vmem>>, vector<8x128xf32>
    tpu.vector_store %arg8[%c0_19, %c0_20], %28 {strides = array<i32>} : memref<8x128xf32, #tpu.memory_space<vmem>>, vector<8x128xf32>,
    return
  }
  func.func @transform_0(%arg0: i32) -> (i32, i32) {
    %c0_i32 = arith.constant 0 : i32
    %c0_i32_0 = arith.constant 0 : i32
    return %arg0, %c0_i32 : i32, i32
  }
  func.func @transform_1(%arg0: i32) -> (i32, i32) {
    %c0_i32 = arith.constant 0 : i32
    %c0_i32_0 = arith.constant 0 : i32
    %c0_i32_1 = arith.constant 0 : i32
    return %c0_i32, %c0_i32_0 : i32, i32
  }
  func.func @transform_2(%arg0: i32) -> (i32, i32) {
    %c0_i32 = arith.constant 0 : i32
    %c0_i32_0 = arith.constant 0 : i32
    %c0_i32_1 = arith.constant 0 : i32
    return %c0_i32, %c0_i32_0 : i32, i32
  }
  func.func @transform_3(%arg0: i32) -> (i32, i32) {
    %c0_i32 = arith.constant 0 : i32
    %c0_i32_0 = arith.constant 0 : i32
    %c0_i32_1 = arith.constant 0 : i32
    return %c0_i32, %c0_i32_0 : i32, i32
  }
  func.func @transform_4(%arg0: i32) -> (i32, i32) {
    %c0_i32 = arith.constant 0 : i32
    %c0_i32_0 = arith.constant 0 : i32
    %c0_i32_1 = arith.constant 0 : i32
    return %c0_i32, %c0_i32_0 : i32, i32
  }
  func.func @transform_5(%arg0: i32) -> (i32, i32) {
    %c0_i32 = arith.constant 0 : i32
    %c0_i32_0 = arith.constant 0 : i32
    %c0_i32_1 = arith.constant 0 : i32
    return %c0_i32, %c0_i32_0 : i32, i32
  }
  func.func @transform_6(%arg0: i32) -> (i32, i32) {
    %c0_i32 = arith.constant 0 : i32
    %c0_i32_0 = arith.constant 0 : i32
    %c0_i32_1 = arith.constant 0 : i32
    return %c0_i32, %c0_i32_0 : i32, i32
  }
  func.func @transform_7(%arg0: i32) -> (i32, i32) {
    %c0_i32 = arith.constant 0 : i32
    %c0_i32_0 = arith.constant 0 : i32
    return %arg0, %c0_i32 : i32, i32
  }
}

</mosaic_0001>

<llo_original>
// kernel: actor_forward.1
$region0: #{actor_forward.1}
  #allocation0 [shape = 'u32[]', space=smem, size = 0x4, offset = 0x4, fixed_abs, tag = 'smem constant byte address 0x4 - core index']
  #allocation1 [shape = 'u32[144,128]{1,0:T(1,128)}', space=vmem, size = 0x12000, scoped, tag = 'internal scratch']
  %s0 = inlined_call_operand.vmem [shape: f32[8,8], index: 0, kind: input, shape index: {}]
  %s1 = inlined_call_operand.vmem [shape: f32[8,128], index: 1, kind: input, shape index: {}]
  %s2 = inlined_call_operand.vmem [shape: f32[1,128], index: 2, kind: input, shape index: {}]
  %s3 = inlined_call_operand.hbm [shape: f32[128,128], index: 3, kind: input, shape index: {}]
  %s4 = inlined_call_operand.vmem [shape: f32[1,128], index: 4, kind: input, shape index: {}]
  %s5 = inlined_call_operand.hbm [shape: f32[128,128], index: 5, kind: input, shape index: {}]
  %s6 = inlined_call_operand.vmem [shape: f32[1,128], index: 6, kind: input, shape index: {}]
  %s7 = inlined_call_operand.vmem [shape: f32[8,128], index: 7, kind: output, shape index: {}]
  %s8 = sld [smem:[#allocation0]]
  $region46: #{actor_forward.1} parent=0
    _
  %s10 = ssub.s32 1, %s8
  %s11 = scalar_select 0, %s10, %s8
  $region1: #{actor_forward.1} parent=0
    #allocation2 [shape = 'u8[65536]{0}', space=vmem, size = 0x10000, scoped, tag = 'input window, operand 3, single buffered']
    #allocation3 [shape = 's32[1]{0}', space=sflag, size = 0x4, scoped, tag = 'scoped memory for actor_forward.1']
    #allocation4 [shape = 'u8[65536]{0}', space=vmem, size = 0x10000, scoped, tag = 'input window, operand 5, single buffered']
    #allocation5 [shape = 's32[1]{0}', space=sflag, size = 0x4, scoped, tag = 'scoped memory for actor_forward.1']
    %12 = vsyncpa [#allocation3], 0
    %13 = vsyncpa [#allocation5], 0
    // Predicated region
    $region2: #{actor_forward.1} parent=1 // pred_check
      _
    $region3: #{actor_forward.1} parent=1 // pred_check_branch
      %15 = sbr.rel (0) target = $region5
    $region4: #{actor_forward.1} parent=1 // pred_region
      _
    $region5: #{actor_forward.1} parent=1 // pred_fallthru
      _
    // Predicated region
    $region6: #{actor_forward.1} parent=1 // pred_check
      _
    $region7: #{actor_forward.1} parent=1 // pred_check_branch
      %17 = sbr.rel (0) target = $region9
    $region8: #{actor_forward.1} parent=1 // pred_region
      _
    $region9: #{actor_forward.1} parent=1 // pred_fallthru
      _
    // Predicated region
    $region10: #{actor_forward.1} parent=1 // pred_check
      _
    $region11: #{actor_forward.1} parent=1 // pred_check_branch
      %19 = sbr.rel (0) target = $region13
    $region12: #{actor_forward.1} parent=1 // pred_region
      _
    $region13: #{actor_forward.1} parent=1 // pred_fallthru
      _
    // Predicated region
    $region14: #{actor_forward.1} parent=1 // pred_check
      _
    $region15: #{actor_forward.1} parent=1 // pred_check_branch
      %21 = sbr.rel (0) target = $region17
    $region16: #{actor_forward.1} parent=1 // pred_region
      %s23 = ssub.s32 2048, 2048
      %24 = vsyncadd [#allocation3], %s23
      %s25 = sshll.u32 [#allocation2], 4
      %s26 = int_to_ptr.vmem [resolvable:$true] %s25
      %31 = dma.hbm_to_vmem [thread:$0]  %s3, 2048, %s26, [#allocation3], 128, 128, 8
    $region17: #{actor_forward.1} parent=1 // pred_fallthru
      _
    // Predicated region
    $region18: #{actor_forward.1} parent=1 // pred_check
      _
    $region19: #{actor_forward.1} parent=1 // pred_check_branch
      %33 = sbr.rel (0) target = $region21
    $region20: #{actor_forward.1} parent=1 // pred_region
      _
    $region21: #{actor_forward.1} parent=1 // pred_fallthru
      _
    // Predicated region
    $region22: #{actor_forward.1} parent=1 // pred_check
      _
    $region23: #{actor_forward.1} parent=1 // pred_check_branch
      %35 = sbr.rel (0) target = $region25
    $region24: #{actor_forward.1} parent=1 // pred_region
      %s37 = ssub.s32 2048, 2048
      %38 = vsyncadd [#allocation5], %s37
      %s39 = sshll.u32 [#allocation4], 4
      %s40 = int_to_ptr.vmem [resolvable:$true] %s39
      %45 = dma.hbm_to_vmem [thread:$0]  %s5, 2048, %s40, [#allocation5], 128, 128, 8
    $region25: #{actor_forward.1} parent=1 // pred_fallthru
      _
    // Predicated region
    $region26: #{actor_forward.1} parent=1 // pred_check
      _
    $region27: #{actor_forward.1} parent=1 // pred_check_branch
      %47 = sbr.rel (0) target = $region29
    $region28: #{actor_forward.1} parent=1 // pred_region
      _
    $region29: #{actor_forward.1} parent=1 // pred_fallthru
      _
    // Predicated region
    $region30: #{actor_forward.1} parent=1 // pred_check
      _
    $region31: #{actor_forward.1} parent=1 // pred_check_branch
      %49 = sbr.rel (0) target = $region33
    $region32: #{actor_forward.1} parent=1 // pred_region
      %50 = dma.done [#allocation3], 2048
    $region33: #{actor_forward.1} parent=1 // pred_fallthru
      _
    // Predicated region
    $region34: #{actor_forward.1} parent=1 // pred_check
      _
    $region35: #{actor_forward.1} parent=1 // pred_check_branch
      %52 = sbr.rel (0) target = $region37
    $region36: #{actor_forward.1} parent=1 // pred_region
      %53 = dma.done [#allocation5], 2048
    $region37: #{actor_forward.1} parent=1 // pred_fallthru
      _
    %v54 = vld [vmem:[%s0] sm:$0xff]
    %v55 = vld [vmem:[%s1] sm:$0xff]
    %v56 = vld [vmem:[%s2] sm:$0x1]
    %v58 = vlaneseq
    %v59 = vshrl.u32 %v58, 7
    %v60 = vsub.s32 0, %v59
    %v61 = vrot.slane %v56, %v60
    %vm63 = vcmask 64512
    %v65 = vsel %vm63, %v54, 0
    %67 = vmatprep.subr.mxu0 0.0
    %68 = vmatpush1.msra.mxu0 %v55
    %69 = vmatprep.subr.mxu0 0.0
    %70 = vmatpush1.msra.mxu0 0.0
    %71 = vmatprep.subr.mxu0 0.0
    %72 = vmatpush1.msra.mxu0 0.0
    %73 = vmatprep.subr.mxu0 0.0
    %74 = vmatpush1.msra.mxu0 0.0
    %75 = vmatprep.subr.mxu0 0.0
    %76 = vmatpush1.msra.mxu0 0.0
    %77 = vmatprep.subr.mxu0 0.0
    %78 = vmatpush1.msra.mxu0 0.0
    %79 = vmatprep.subr.mxu0 0.0
    %80 = vmatpush1.msra.mxu0 0.0
    %81 = vmatprep.subr.mxu0 0.0
    %82 = vmatpush1.msra.mxu0 0.0
    %83 = vmatprep.subr.mxu0 0.0
    %84 = vmatpush1.msra.mxu0 0.0
    %85 = vmatprep.subr.mxu0 0.0
    %86 = vmatpush1.msra.mxu0 0.0
    %87 = vmatprep.subr.mxu0 0.0
    %88 = vmatpush1.msra.mxu0 0.0
    %89 = vmatprep.subr.mxu0 0.0
    %90 = vmatpush1.msra.mxu0 0.0
    %91 = vmatprep.subr.mxu0 0.0
    %92 = vmatpush1.msra.mxu0 0.0
    %93 = vmatprep.subr.mxu0 0.0
    %94 = vmatpush1.msra.mxu0 0.0
    %95 = vmatprep.subr.mxu0 0.0
    %96 = vmatpush1.msra.mxu0 0.0
    %97 = vmatprep.subr.mxu0 0.0
    %98 = vmatpush1.msra.mxu0 0.0
    %99 = vmatprep.subr.mxu0 0.0
    %100 = vmatpush1.msra.mxu0 0.0
    %101 = vmatprep.subr.mxu0 0.0
    %102 = vmatpush1.msra.mxu0 0.0
    %103 = vmatprep.subr.mxu0 0.0
    %104 = vmatpush1.msra.mxu0 0.0
    %105 = vmatprep.subr.mxu0 0.0
    %106 = vmatpush1.msra.mxu0 0.0
    %107 = vmatprep.subr.mxu0 0.0
    %108 = vmatpush1.msra.mxu0 0.0
    %109 = vmatprep.subr.mxu0 0.0
    %110 = vmatpush1.msra.mxu0 0.0
    %111 = vmatprep.subr.mxu0 0.0
    %112 = vmatpush1.msra.mxu0 0.0
    %113 = vmatprep.subr.mxu0 0.0
    %114 = vmatpush1.msra.mxu0 0.0
    %115 = vmatprep.subr.mxu0 0.0
    %116 = vmatpush1.msra.mxu0 0.0
    %117 = vmatprep.subr.mxu0 0.0
    %118 = vmatpush1.msra.mxu0 0.0
    %119 = vmatprep.subr.mxu0 0.0
    %120 = vmatpush1.msra.mxu0 0.0
    %121 = vmatprep.subr.mxu0 0.0
    %122 = vmatpush1.msra.mxu0 0.0
    %123 = vmatprep.subr.mxu0 0.0
    %124 = vmatpush1.msra.mxu0 0.0
    %125 = vmatprep.subr.mxu0 0.0
    %126 = vmatpush1.msra.mxu0 0.0
    %127 = vmatprep.subr.mxu0 0.0
    %128 = vmatpush1.msra.mxu0 0.0
    %129 = vmatprep.subr.mxu0 0.0
    %130 = vmatpush1.msra.mxu0 0.0
    %131 = vmatprep.mubr.f32.mxu0 0.0
    %132 = vmatmul.mubr.f32.gmra.mrb[0].mxu0 %v65
    %v133 = vpop.f32.mrb[0].mxu0
    %v134 = vadd.f32 %v61, %v133
    %v135 = vpop.f32.mrb[0].mxu0
    %136 = vdwg.mxu0
    %v137 = vmax.f32 %v134, 0.0
    %v138 = vld [vmem:[#allocation2] sm:$0xff]
    %v139 = vld [vmem:[#allocation2 + $0x8] sm:$0xff]
    %v140 = vld [vmem:[#allocation2 + $0x10] sm:$0xff]
    %v141 = vld [vmem:[#allocation2 + $0x18] sm:$0xff]
    %v142 = vld [vmem:[#allocation2 + $0x20] sm:$0xff]
    %v143 = vld [vmem:[#allocation2 + $0x28] sm:$0xff]
    %v144 = vld [vmem:[#allocation2 + $0x30] sm:$0xff]
    %v145 = vld [vmem:[#allocation2 + $0x38] sm:$0xff]
    %v146 = vld [vmem:[#allocation2 + $0x40] sm:$0xff]
    %v147 = vld [vmem:[#allocation2 + $0x48] sm:$0xff]
    %v148 = vld [vmem:[#allocation2 + $0x50] sm:$0xff]
    %v149 = vld [vmem:[#allocation2 + $0x58] sm:$0xff]
    %v150 = vld [vmem:[#allocation2 + $0x60] sm:$0xff]
    %v151 = vld [vmem:[#allocation2 + $0x68] sm:$0xff]
    %v152 = vld [vmem:[#allocation2 + $0x70] sm:$0xff]
    %v153 = vld [vmem:[#allocation2 + $0x78] sm:$0xff]
    %v154 = vld [vmem:[%s4] sm:$0x1]
    %v156 = vlaneseq
    %v157 = vshrl.u32 %v156, 7
    %v158 = vsub.s32 0, %v157
    %v159 = vrot.slane %v154, %v158
    %161 = vmatprep.subr.mxu0 0.0
    %162 = vmatpush1.msra.mxu0 %v138
    %163 = vmatprep.subr.mxu0 0.0
    %164 = vmatpush1.msra.mxu0 %v139
    %165 = vmatprep.subr.mxu0 0.0
    %166 = vmatpush1.msra.mxu0 %v140
    %167 = vmatprep.subr.mxu0 0.0
    %168 = vmatpush1.msra.mxu0 %v141
    %169 = vmatprep.subr.mxu0 0.0
    %170 = vmatpush1.msra.mxu0 %v142
    %171 = vmatprep.subr.mxu0 0.0
    %172 = vmatpush1.msra.mxu0 %v143
    %173 = vmatprep.subr.mxu0 0.0
    %174 = vmatpush1.msra.mxu0 %v144
    %175 = vmatprep.subr.mxu0 0.0
    %176 = vmatpush1.msra.mxu0 %v145
    %177 = vmatprep.subr.mxu0 0.0
    %178 = vmatpush1.msra.mxu0 %v146
    %179 = vmatprep.subr.mxu0 0.0
    %180 = vmatpush1.msra.mxu0 %v147
    %181 = vmatprep.subr.mxu0 0.0
    %182 = vmatpush1.msra.mxu0 %v148
    %183 = vmatprep.subr.mxu0 0.0
    %184 = vmatpush1.msra.mxu0 %v149
    %185 = vmatprep.subr.mxu0 0.0
    %186 = vmatpush1.msra.mxu0 %v150
    %187 = vmatprep.subr.mxu0 0.0
    %188 = vmatpush1.msra.mxu0 %v151
    %189 = vmatprep.subr.mxu0 0.0
    %190 = vmatpush1.msra.mxu0 %v152
    %191 = vmatprep.subr.mxu0 0.0
    %192 = vmatpush1.msra.mxu0 %v153
    %193 = vmatprep.subr.mxu0 0.0
    %194 = vmatpush1.msra.mxu0 0.0
    %195 = vmatprep.subr.mxu0 0.0
    %196 = vmatpush1.msra.mxu0 0.0
    %197 = vmatprep.subr.mxu0 0.0
    %198 = vmatpush1.msra.mxu0 0.0
    %199 = vmatprep.subr.mxu0 0.0
    %200 = vmatpush1.msra.mxu0 0.0
    %201 = vmatprep.subr.mxu0 0.0
    %202 = vmatpush1.msra.mxu0 0.0
    %203 = vmatprep.subr.mxu0 0.0
    %204 = vmatpush1.msra.mxu0 0.0
    %205 = vmatprep.subr.mxu0 0.0
    %206 = vmatpush1.msra.mxu0 0.0
    %207 = vmatprep.subr.mxu0 0.0
    %208 = vmatpush1.msra.mxu0 0.0
    %209 = vmatprep.subr.mxu0 0.0
    %210 = vmatpush1.msra.mxu0 0.0
    %211 = vmatprep.subr.mxu0 0.0
    %212 = vmatpush1.msra.mxu0 0.0
    %213 = vmatprep.subr.mxu0 0.0
    %214 = vmatpush1.msra.mxu0 0.0
    %215 = vmatprep.subr.mxu0 0.0
    %216 = vmatpush1.msra.mxu0 0.0
    %217 = vmatprep.subr.mxu0 0.0
    %218 = vmatpush1.msra.mxu0 0.0
    %219 = vmatprep.subr.mxu0 0.0
    %220 = vmatpush1.msra.mxu0 0.0
    %221 = vmatprep.subr.mxu0 0.0
    %222 = vmatpush1.msra.mxu0 0.0
    %223 = vmatprep.subr.mxu0 0.0
    %224 = vmatpush1.msra.mxu0 0.0
    %225 = vmatprep.mubr.f32.mxu0 0.0
    %226 = vmatmul.mubr.f32.gmra.mrb[0].mxu0 %v137
    %v227 = vpop.f32.mrb[0].mxu0
    %v228 = vadd.f32 %v159, %v227
    %v229 = vpop.f32.mrb[0].mxu0
    %230 = vdwg.mxu0
    %v231 = vmax.f32 %v228, 0.0
    %v232 = vld [vmem:[#allocation4] sm:$0xff]
    %v233 = vld [vmem:[#allocation4 + $0x8] sm:$0xff]
    %v234 = vld [vmem:[#allocation4 + $0x10] sm:$0xff]
    %v235 = vld [vmem:[#allocation4 + $0x18] sm:$0xff]
    %v236 = vld [vmem:[#allocation4 + $0x20] sm:$0xff]
    %v237 = vld [vmem:[#allocation4 + $0x28] sm:$0xff]
    %v238 = vld [vmem:[#allocation4 + $0x30] sm:$0xff]
    %v239 = vld [vmem:[#allocation4 + $0x38] sm:$0xff]
    %v240 = vld [vmem:[#allocation4 + $0x40] sm:$0xff]
    %v241 = vld [vmem:[#allocation4 + $0x48] sm:$0xff]
    %v242 = vld [vmem:[#allocation4 + $0x50] sm:$0xff]
    %v243 = vld [vmem:[#allocation4 + $0x58] sm:$0xff]
    %v244 = vld [vmem:[#allocation4 + $0x60] sm:$0xff]
    %v245 = vld [vmem:[#allocation4 + $0x68] sm:$0xff]
    %v246 = vld [vmem:[#allocation4 + $0x70] sm:$0xff]
    %v247 = vld [vmem:[#allocation4 + $0x78] sm:$0xff]
    %v248 = vld [vmem:[%s6] sm:$0x1]
    %v250 = vlaneseq
    %v251 = vshrl.u32 %v250, 7
    %v252 = vsub.s32 0, %v251
    %v253 = vrot.slane %v248, %v252
    %255 = vmatprep.subr.mxu0 0.0
    %256 = vmatpush1.msra.mxu0 %v232
    %257 = vmatprep.subr.mxu0 0.0
    %258 = vmatpush1.msra.mxu0 %v233
    %259 = vmatprep.subr.mxu0 0.0
    %260 = vmatpush1.msra.mxu0 %v234
    %261 = vmatprep.subr.mxu0 0.0
    %262 = vmatpush1.msra.mxu0 %v235
    %263 = vmatprep.subr.mxu0 0.0
    %264 = vmatpush1.msra.mxu0 %v236
    %265 = vmatprep.subr.mxu0 0.0
    %266 = vmatpush1.msra.mxu0 %v237
    %267 = vmatprep.subr.mxu0 0.0
    %268 = vmatpush1.msra.mxu0 %v238
    %269 = vmatprep.subr.mxu0 0.0
    %270 = vmatpush1.msra.mxu0 %v239
    %271 = vmatprep.subr.mxu0 0.0
    %272 = vmatpush1.msra.mxu0 %v240
    %273 = vmatprep.subr.mxu0 0.0
    %274 = vmatpush1.msra.mxu0 %v241
    %275 = vmatprep.subr.mxu0 0.0
    %276 = vmatpush1.msra.mxu0 %v242
    %277 = vmatprep.subr.mxu0 0.0
    %278 = vmatpush1.msra.mxu0 %v243
    %279 = vmatprep.subr.mxu0 0.0
    %280 = vmatpush1.msra.mxu0 %v244
    %281 = vmatprep.subr.mxu0 0.0
    %282 = vmatpush1.msra.mxu0 %v245
    %283 = vmatprep.subr.mxu0 0.0
    %284 = vmatpush1.msra.mxu0 %v246
    %285 = vmatprep.subr.mxu0 0.0
    %286 = vmatpush1.msra.mxu0 %v247
    %287 = vmatprep.subr.mxu0 0.0
    %288 = vmatpush1.msra.mxu0 0.0
    %289 = vmatprep.subr.mxu0 0.0
    %290 = vmatpush1.msra.mxu0 0.0
    %291 = vmatprep.subr.mxu0 0.0
    %292 = vmatpush1.msra.mxu0 0.0
    %293 = vmatprep.subr.mxu0 0.0
    %294 = vmatpush1.msra.mxu0 0.0
    %295 = vmatprep.subr.mxu0 0.0
    %296 = vmatpush1.msra.mxu0 0.0
    %297 = vmatprep.subr.mxu0 0.0
    %298 = vmatpush1.msra.mxu0 0.0
    %299 = vmatprep.subr.mxu0 0.0
    %300 = vmatpush1.msra.mxu0 0.0
    %301 = vmatprep.subr.mxu0 0.0
    %302 = vmatpush1.msra.mxu0 0.0
    %303 = vmatprep.subr.mxu0 0.0
    %304 = vmatpush1.msra.mxu0 0.0
    %305 = vmatprep.subr.mxu0 0.0
    %306 = vmatpush1.msra.mxu0 0.0
    %307 = vmatprep.subr.mxu0 0.0
    %308 = vmatpush1.msra.mxu0 0.0
    %309 = vmatprep.subr.mxu0 0.0
    %310 = vmatpush1.msra.mxu0 0.0
    %311 = vmatprep.subr.mxu0 0.0
    %312 = vmatpush1.msra.mxu0 0.0
    %313 = vmatprep.subr.mxu0 0.0
    %314 = vmatpush1.msra.mxu0 0.0
    %315 = vmatprep.subr.mxu0 0.0
    %316 = vmatpush1.msra.mxu0 0.0
    %317 = vmatprep.subr.mxu0 0.0
    %318 = vmatpush1.msra.mxu0 0.0
    %319 = vmatprep.mubr.f32.mxu0 0.0
    %320 = vmatmul.mubr.f32.gmra.mrb[0].mxu0 %v231
    %v321 = vpop.f32.mrb[0].mxu0
    %v322 = vadd.f32 %v253, %v321
    %v323 = vpop.f32.mrb[0].mxu0
    %324 = vdwg.mxu0
    %325 = vmax.xlane.f32.xlu0 %v322
    %v326 = vpop.xlane.xlu0 %325
    %v327 = vsub.f32 %v322, %v326
    %v328 = vmul.f32 %v327, 1.442695
    %v329 = vpow.pop %v328
    %330 = vadd.xlane.f32.xlu0 %v329
    %v331 = vpop.xlane.xlu0 %330
    %v332 = vrcp.pop %v331
    %v333 = vmul.f32 %v329, %v332
    %334 = vst [vmem:[%s7] sm:$0xff] %v333
    // Predicated region
    $region38: #{actor_forward.1} parent=1 // pred_check
      _
    $region39: #{actor_forward.1} parent=1 // pred_check_branch
      %336 = sbr.rel (0) target = $region41
    $region40: #{actor_forward.1} parent=1 // pred_region
      _
    $region41: #{actor_forward.1} parent=1 // pred_fallthru
      _
    // Predicated region
    $region42: #{actor_forward.1} parent=1 // pred_check
      _
    $region43: #{actor_forward.1} parent=1 // pred_check_branch
      %338 = sbr.rel (0) target = $region45
    $region44: #{actor_forward.1} parent=1 // pred_region
      _
    $region45: #{actor_forward.1} parent=1 // pred_fallthru
      _
    %339 = vsyncpa [#allocation3], 1
    %340 = vsyncpa [#allocation5], 1

</llo_original>
